<compile_context>
chip_gen: v7x
topology: tpu7x:2x2x1
jax: 0.10.0
libtpu: 0.0.40
codegen_flags: <defaults>
</compile_context>

<pallas_src>
import jax
import jax.numpy as jnp
from jax.experimental import pallas as pl
from jax.experimental.pallas import tpu as pltpu

LANE = 128
MAX_ROW_BLOCK = 2048  # 2048 x 128 x 4B = 1 MiB per f32 input tile


def _cdiv(a, b):
    return -(-a // b)


def _round_up(a, b):
    return _cdiv(a, b) * b


def _loss_kernel(inp_ref, out_ref, adv_ref, num_ref, den_ref):
    j = pl.program_id(1)

    # Output blocks keep the same block index across the (arbitrary) reduction
    # axis, so they stay resident in VMEM and act as (8, 128) f32 accumulators.
    @pl.when(j == 0)
    def _():
        num_ref[...] = jnp.zeros_like(num_ref)
        den_ref[...] = jnp.zeros_like(den_ref)

    o = out_ref[...]
    a = adv_ref[...]
    x = inp_ref[...]

    # abs-diff in the input dtype; widen to f32 only for the accumulate.
    dn = jnp.abs(o - a).astype(jnp.float32)
    dd = jnp.abs(o - x).astype(jnp.float32)

    # Fold the (row_block, 128) tile into the (8, 128) accumulator via a
    # tile-boundary-aligned reshape (free) and sublane-group VPU adds.
    num_ref[...] += jnp.sum(dn.reshape(-1, 8, LANE), axis=0)
    den_ref[...] += jnp.sum(dd.reshape(-1, 8, LANE), axis=0)


def contrastive_loss(inp, out, adv):
    """loss = mean(|out - adv|) / mean(|out - inp|), all inputs same shape."""
    assert inp.shape == out.shape == adv.shape
    assert inp.dtype == out.dtype == adv.dtype

    dtype = out.dtype
    itemsize = jnp.dtype(dtype).itemsize
    n_elem = out.size

    # Sub-32-bit dtypes pack 2 rows per sublane -> keep row blocks /16.
    row_align = 16 if itemsize < 4 else 8

    rows_min = _cdiv(n_elem, LANE)
    row_block = min(MAX_ROW_BLOCK, _round_up(rows_min, row_align))
    n_tiles = _cdiv(rows_min, row_block)

    # Leading "parallel" axis of size 2 when there is enough work -> both
    # TensorCores on v7x stream HBM; harmless on single-TC chips.
    if n_tiles >= 2:
        n_outer = 2
        n_inner = _cdiv(n_tiles, 2)
    else:
        n_outer, n_inner = 1, n_tiles

    rows_padded = n_outer * n_inner * row_block
    padded_len = rows_padded * LANE

    def _prep(x):
        xf = x.reshape(-1)
        if padded_len != n_elem:
            # Zeros contribute 0 to both sums -> ratio unchanged.
            xf = jnp.pad(xf, (0, padded_len - n_elem))
        return xf.reshape(rows_padded, LANE)

    inp2, out2, adv2 = _prep(inp), _prep(out), _prep(adv)

    in_block = pl.BlockSpec((row_block, LANE), lambda i, j: (i * n_inner + j, 0))
    acc_block = pl.BlockSpec((None, 8, LANE), lambda i, j: (i, 0, 0))

    num_out, den_out = pl.pallas_call(
        _loss_kernel,
        out_shape=(
            jax.ShapeDtypeStruct((n_outer, 8, LANE), jnp.float32),
            jax.ShapeDtypeStruct((n_outer, 8, LANE), jnp.float32),
        ),
        grid_spec=pltpu.PrefetchScalarGridSpec(
            num_scalar_prefetch=0,
            grid=(n_outer, n_inner),
            in_specs=[in_block, in_block, in_block],
            out_specs=[acc_block, acc_block],
        ),
        compiler_params=pltpu.CompilerParams(
            dimension_semantics=("parallel", "arbitrary"),
            vmem_limit_bytes=32 * 1024 * 1024,
        ),
        cost_estimate=pl.CostEstimate(
            flops=5 * n_elem,
            transcendentals=0,
            bytes_accessed=3 * n_elem * itemsize,
        ),
    )(inp2, out2, adv2)

    # Tiny final reduction + division (equal counts, so sum/sum == mean/mean).
    return jnp.sum(num_out) / jnp.sum(den_out)


if __name__ == "__main__":
    key = jax.random.PRNGKey(0)
    k1, k2, k3 = jax.random.split(key, 3)
    shape = (2, 4, 16, 16)  # NCHW

    x_in = jax.random.normal(k1, shape, dtype=jnp.float32)
    x_out = jax.random.normal(k2, shape, dtype=jnp.float32)
    x_adv = jax.random.normal(k3, shape, dtype=jnp.float32)

    loss = contrastive_loss(x_in, x_out, x_adv)
    jax.block_until_ready(loss)

    # Reference check (plain JAX, mirrors F.l1_loss with mean reduction).
    ref = jnp.mean(jnp.abs(x_out - x_adv)) / jnp.mean(jnp.abs(x_out - x_in))
    assert jnp.allclose(loss, ref, rtol=1e-5, atol=1e-6), (loss, ref)

    print("KERNEL_OK")
</pallas_src>

<mosaic_0001>
module attributes {stable_mosaic.version = 11 : i64} {
  func.func @_loss_kernel(%arg0: i32, %arg1: i32, %arg2: memref<16x128xf32, #tpu.memory_space<vmem>>, %arg3: memref<16x128xf32, #tpu.memory_space<vmem>>, %arg4: memref<16x128xf32, #tpu.memory_space<vmem>>, %arg5: memref<1x8x128xf32, #tpu.memory_space<vmem>>, %arg6: memref<1x8x128xf32, #tpu.memory_space<vmem>>) attributes {dimension_semantics = [#tpu.dimension_semantics<parallel>, #tpu.dimension_semantics<arbitrary>], iteration_bounds = array<i64: 1, 1>, scalar_prefetch = 0 : i64, scratch_operands = 0 : i64, tpu.core_type = #tpu.core_type<tc>, window_params = [{transform_indices = @transform_0, window_bounds = array<i64: 16, 128>}, {transform_indices = @transform_1, window_bounds = array<i64: 16, 128>}, {transform_indices = @transform_2, window_bounds = array<i64: 16, 128>}, {transform_indices = @transform_3, window_bounds = array<i64: 1, 8, 128>}, {transform_indices = @transform_4, window_bounds = array<i64: 1, 8, 128>}]} {
    %c0_i32 = arith.constant 0 : i32
    %0 = arith.cmpi eq, %arg1, %c0_i32 : i32
    %1 = arith.extui %0 : i1 to i32
    %c0_i32_0 = arith.constant 0 : i32
    %2 = arith.cmpi ne, %1, %c0_i32_0 : i32
    scf.if %2 {
      %cst_19 = arith.constant 0.000000e+00 : f32
      %26 = vector.broadcast %cst_19 : f32 to vector<8x128xf32>
      %c0_20 = arith.constant 0 : index
      %c0_21 = arith.constant 0 : index
      %c0_22 = arith.constant 0 : index
      %27 = vector.load %arg5[%c0_20, %c0_21, %c0_22] : memref<1x8x128xf32, #tpu.memory_space<vmem>>, vector<1x8x128xf32>
      %28 = vector.shape_cast %27 : vector<1x8x128xf32> to vector<8x128xf32>
      %29 = vector.shape_cast %26 : vector<8x128xf32> to vector<1x8x128xf32>
      tpu.vector_store %arg5[%c0_20, %c0_21, %c0_22], %29 {strides = array<i32>} : memref<1x8x128xf32, #tpu.memory_space<vmem>>, vector<1x8x128xf32>,
      %cst_23 = arith.constant 0.000000e+00 : f32
      %30 = vector.broadcast %cst_23 : f32 to vector<8x128xf32>
      %c0_24 = arith.constant 0 : index
      %c0_25 = arith.constant 0 : index
      %c0_26 = arith.constant 0 : index
      %31 = vector.load %arg6[%c0_24, %c0_25, %c0_26] : memref<1x8x128xf32, #tpu.memory_space<vmem>>, vector<1x8x128xf32>
      %32 = vector.shape_cast %31 : vector<1x8x128xf32> to vector<8x128xf32>
      %33 = vector.shape_cast %30 : vector<8x128xf32> to vector<1x8x128xf32>
      tpu.vector_store %arg6[%c0_24, %c0_25, %c0_26], %33 {strides = array<i32>} : memref<1x8x128xf32, #tpu.memory_space<vmem>>, vector<1x8x128xf32>,
    } else {
    }
    %c0 = arith.constant 0 : index
    %c0_1 = arith.constant 0 : index
    %3 = vector.load %arg3[%c0, %c0_1] : memref<16x128xf32, #tpu.memory_space<vmem>>, vector<16x128xf32>
    %c0_2 = arith.constant 0 : index
    %c0_3 = arith.constant 0 : index
    %4 = vector.load %arg4[%c0_2, %c0_3] : memref<16x128xf32, #tpu.memory_space<vmem>>, vector<16x128xf32>
    %c0_4 = arith.constant 0 : index
    %c0_5 = arith.constant 0 : index
    %5 = vector.load %arg2[%c0_4, %c0_5] : memref<16x128xf32, #tpu.memory_space<vmem>>, vector<16x128xf32>
    %6 = arith.subf %3, %4 : vector<16x128xf32>
    %7 = math.absf %6 : vector<16x128xf32>
    %8 = arith.subf %3, %5 : vector<16x128xf32>
    %9 = math.absf %8 : vector<16x128xf32>
    %c0_6 = arith.constant 0 : index
    %c0_7 = arith.constant 0 : index
    %c0_8 = arith.constant 0 : index
    %10 = vector.load %arg5[%c0_6, %c0_7, %c0_8] : memref<1x8x128xf32, #tpu.memory_space<vmem>>, vector<1x8x128xf32>
    %11 = vector.shape_cast %10 : vector<1x8x128xf32> to vector<8x128xf32>
    %12 = vector.shape_cast %7 : vector<16x128xf32> to vector<2x8x128xf32>
    %cst = arith.constant dense<0.000000e+00> : vector<8x128xf32>
    %13 = vector.multi_reduction <add>, %12, %cst [0] : vector<2x8x128xf32> to vector<8x128xf32>
    %14 = arith.addf %11, %13 : vector<8x128xf32>
    %c0_9 = arith.constant 0 : index
    %c0_10 = arith.constant 0 : index
    %c0_11 = arith.constant 0 : index
    %15 = vector.load %arg5[%c0_9, %c0_10, %c0_11] : memref<1x8x128xf32, #tpu.memory_space<vmem>>, vector<1x8x128xf32>
    %16 = vector.shape_cast %15 : vector<1x8x128xf32> to vector<8x128xf32>
    %17 = vector.shape_cast %14 : vector<8x128xf32> to vector<1x8x128xf32>
    tpu.vector_store %arg5[%c0_9, %c0_10, %c0_11], %17 {strides = array<i32>} : memref<1x8x128xf32, #tpu.memory_space<vmem>>, vector<1x8x128xf32>,
    %c0_12 = arith.constant 0 : index
    %c0_13 = arith.constant 0 : index
    %c0_14 = arith.constant 0 : index
    %18 = vector.load %arg6[%c0_12, %c0_13, %c0_14] : memref<1x8x128xf32, #tpu.memory_space<vmem>>, vector<1x8x128xf32>
    %19 = vector.shape_cast %18 : vector<1x8x128xf32> to vector<8x128xf32>
    %20 = vector.shape_cast %9 : vector<16x128xf32> to vector<2x8x128xf32>
    %cst_15 = arith.constant dense<0.000000e+00> : vector<8x128xf32>
    %21 = vector.multi_reduction <add>, %20, %cst_15 [0] : vector<2x8x128xf32> to vector<8x128xf32>
    %22 = arith.addf %19, %21 : vector<8x128xf32>
    %c0_16 = arith.constant 0 : index
    %c0_17 = arith.constant 0 : index
    %c0_18 = arith.constant 0 : index
    %23 = vector.load %arg6[%c0_16, %c0_17, %c0_18] : memref<1x8x128xf32, #tpu.memory_space<vmem>>, vector<1x8x128xf32>
    %24 = vector.shape_cast %23 : vector<1x8x128xf32> to vector<8x128xf32>
    %25 = vector.shape_cast %22 : vector<8x128xf32> to vector<1x8x128xf32>
    tpu.vector_store %arg6[%c0_16, %c0_17, %c0_18], %25 {strides = array<i32>} : memref<1x8x128xf32, #tpu.memory_space<vmem>>, vector<1x8x128xf32>,
    return
  }
  func.func @transform_0(%arg0: i32, %arg1: i32) -> (i32, i32) {
    %c1_i32 = arith.constant 1 : i32
    %0 = arith.muli %arg0, %c1_i32 : i32
    %1 = arith.addi %0, %arg1 : i32
    %c0_i32 = arith.constant 0 : i32
    %c0_i32_0 = arith.constant 0 : i32
    return %1, %c0_i32 : i32, i32
  }
  func.func @transform_1(%arg0: i32, %arg1: i32) -> (i32, i32) {
    %c1_i32 = arith.constant 1 : i32
    %0 = arith.muli %arg0, %c1_i32 : i32
    %1 = arith.addi %0, %arg1 : i32
    %c0_i32 = arith.constant 0 : i32
    %c0_i32_0 = arith.constant 0 : i32
    return %1, %c0_i32 : i32, i32
  }
  func.func @transform_2(%arg0: i32, %arg1: i32) -> (i32, i32) {
    %c1_i32 = arith.constant 1 : i32
    %0 = arith.muli %arg0, %c1_i32 : i32
    %1 = arith.addi %0, %arg1 : i32
    %c0_i32 = arith.constant 0 : i32
    %c0_i32_0 = arith.constant 0 : i32
    return %1, %c0_i32 : i32, i32
  }
  func.func @transform_3(%arg0: i32, %arg1: i32) -> (i32, i32, i32) {
    %c0_i32 = arith.constant 0 : i32
    %c0_i32_0 = arith.constant 0 : i32
    %c0_i32_1 = arith.constant 0 : i32
    return %arg0, %c0_i32, %c0_i32_0 : i32, i32, i32
  }
  func.func @transform_4(%arg0: i32, %arg1: i32) -> (i32, i32, i32) {
    %c0_i32 = arith.constant 0 : i32
    %c0_i32_0 = arith.constant 0 : i32
    %c0_i32_1 = arith.constant 0 : i32
    return %arg0, %c0_i32, %c0_i32_0 : i32, i32, i32
  }
}

</mosaic_0001>

<llo_original>
// kernel: tpu_custom_call.1
$region0: #{tpu_custom_call.1}
  #allocation0 [shape = 'u32[]', space=smem, size = 0x4, offset = 0x4, fixed_abs, tag = 'smem constant byte address 0x4 - core index']
  #allocation1 [shape = 'u32[144,128]{1,0:T(1,128)}', space=vmem, size = 0x12000, scoped, tag = 'internal scratch']
  %s0 = inlined_call_operand.hbm [shape: f32[16,128], index: 0, kind: input, shape index: {}]
  %s1 = inlined_call_operand.hbm [shape: f32[16,128], index: 1, kind: input, shape index: {}]
  %s2 = inlined_call_operand.hbm [shape: f32[16,128], index: 2, kind: input, shape index: {}]
  %s3 = inlined_call_operand.hbm [shape: f32[1,8,128], index: 3, kind: output, shape index: {0}]
  %s4 = inlined_call_operand.hbm [shape: f32[1,8,128], index: 4, kind: output, shape index: {1}]
  %5 = xla_tuple %s3, %s4
  %s6 = sld [smem:[#allocation0]]
  $region46: #{tpu_custom_call.1} parent=0
    _
  %s8 = ssub.s32 1, %s6
  %s9 = scalar_select 0, %s8, %s6
  $region1: #{tpu_custom_call.1} parent=0
    #allocation2 [shape = 'u8[8192]{0}', space=vmem, size = 0x2000, scoped, tag = 'input window, operand 0, single buffered']
    #allocation3 [shape = 's32[1]{0}', space=sflag, size = 0x4, scoped, tag = 'scoped memory for tpu_custom_call.1']
    #allocation4 [shape = 's32[1]{0}', space=sflag, size = 0x4, scoped, tag = 'scoped memory for tpu_custom_call.1']
    #allocation5 [shape = 'u8[8192]{0}', space=vmem, size = 0x2000, scoped, tag = 'input window, operand 1, single buffered']
    #allocation6 [shape = 's32[1]{0}', space=sflag, size = 0x4, scoped, tag = 'scoped memory for tpu_custom_call.1']
    #allocation7 [shape = 'u8[8192]{0}', space=vmem, size = 0x2000, scoped, tag = 'input window, operand 2, single buffered']
    #allocation8 [shape = 'u8[4096]{0}', space=vmem, size = 0x1000, scoped, tag = 'output window, operand 0, single buffered']
    #allocation9 [shape = 'u8[4096]{0}', space=vmem, size = 0x1000, scoped, tag = 'output window, operand 1, single buffered']
    #allocation10 [shape = 's32[1]{0}', space=sflag, size = 0x4, scoped, tag = 'scoped memory for tpu_custom_call.1']
    %10 = vsyncpa [#allocation3], 0
    %11 = vsyncpa [#allocation6], 0
    %12 = vsyncpa [#allocation4], 0
    %13 = vsyncpa [#allocation10], 0
    // Predicated region
    $region2: #{tpu_custom_call.1} parent=1 // pred_check
      _
    $region3: #{tpu_custom_call.1} parent=1 // pred_check_branch
      %15 = sbr.rel (0) target = $region5
    $region4: #{tpu_custom_call.1} parent=1 // pred_region
      %s16 = sadd.s32 0, 0
      %s17 = smul.u32 2, %s16
      %s19 = ssub.s32 256, 256
      %20 = vsyncadd [#allocation3], %s19
      %s21 = smul.addr %s17, 128
      %s22 = scalar_lea.hbm %s0, %s21
      %s23 = sshll.u32 [#allocation2], 4
      %s24 = int_to_ptr.vmem [resolvable:$true] %s23
      %29 = dma.hbm_to_vmem [thread:$0]  %s22, 256, %s24, [#allocation3], 128, 128, 8
    $region5: #{tpu_custom_call.1} parent=1 // pred_fallthru
      _
    // Predicated region
    $region6: #{tpu_custom_call.1} parent=1 // pred_check
      _
    $region7: #{tpu_custom_call.1} parent=1 // pred_check_branch
      %31 = sbr.rel (0) target = $region9
    $region8: #{tpu_custom_call.1} parent=1 // pred_region
      %s32 = sadd.s32 0, 0
      %s33 = smul.u32 2, %s32
      %s35 = ssub.s32 256, 256
      %36 = vsyncadd [#allocation6], %s35
      %s37 = smul.addr %s33, 128
      %s38 = scalar_lea.hbm %s1, %s37
      %s39 = sshll.u32 [#allocation5], 4
      %s40 = int_to_ptr.vmem [resolvable:$true] %s39
      %45 = dma.hbm_to_vmem [thread:$0]  %s38, 256, %s40, [#allocation6], 128, 128, 8
    $region9: #{tpu_custom_call.1} parent=1 // pred_fallthru
      _
    // Predicated region
    $region10: #{tpu_custom_call.1} parent=1 // pred_check
      _
    $region11: #{tpu_custom_call.1} parent=1 // pred_check_branch
      %47 = sbr.rel (0) target = $region13
    $region12: #{tpu_custom_call.1} parent=1 // pred_region
      %s48 = sadd.s32 0, 0
      %s49 = smul.u32 2, %s48
      %s51 = ssub.s32 256, 256
      %52 = vsyncadd [#allocation6], %s51
      %s53 = smul.addr %s49, 128
      %s54 = scalar_lea.hbm %s2, %s53
      %s55 = sshll.u32 [#allocation7], 4
      %s56 = int_to_ptr.vmem [resolvable:$true] %s55
      %61 = dma.hbm_to_vmem [thread:$0]  %s54, 256, %s56, [#allocation6], 128, 128, 8
    $region13: #{tpu_custom_call.1} parent=1 // pred_fallthru
      _
    // Predicated region
    $region14: #{tpu_custom_call.1} parent=1 // pred_check
      _
    $region15: #{tpu_custom_call.1} parent=1 // pred_check_branch
      %63 = sbr.rel (0) target = $region17
    $region16: #{tpu_custom_call.1} parent=1 // pred_region
      %64 = dma.done [#allocation3], 256
    $region17: #{tpu_custom_call.1} parent=1 // pred_fallthru
      _
    // Predicated region
    $region18: #{tpu_custom_call.1} parent=1 // pred_check
      _
    $region19: #{tpu_custom_call.1} parent=1 // pred_check_branch
      %66 = sbr.rel (0) target = $region21
    $region20: #{tpu_custom_call.1} parent=1 // pred_region
      %67 = dma.done [#allocation6], 256
    $region21: #{tpu_custom_call.1} parent=1 // pred_fallthru
      _
    // Predicated region
    $region22: #{tpu_custom_call.1} parent=1 // pred_check
      _
    $region23: #{tpu_custom_call.1} parent=1 // pred_check_branch
      %69 = sbr.rel (0) target = $region25
    $region24: #{tpu_custom_call.1} parent=1 // pred_region
      %70 = dma.done [#allocation6], 256
    $region25: #{tpu_custom_call.1} parent=1 // pred_fallthru
      _
    %s71 = sadd.s32 0, 0
    %s72 = smul.u32 2, %s71
    %s73 = sadd.s32 0, 0
    %s74 = smul.u32 2, %s73
    %s75 = sadd.s32 0, 0
    %s76 = smul.u32 2, %s75
    %p77 = scmp.eq.s32.totalorder 0, 0
    // Predicated region
    $region26: #{tpu_custom_call.1} parent=1 // pred_check
      %p78 = pneg %p77
    $region27: #{tpu_custom_call.1} parent=1 // pred_check_branch
      %80 = sbr.rel (%p78) target = $region29
    $region28: #{tpu_custom_call.1} parent=1 // pred_region
      %81 = vst [vmem:[#allocation8] sm:$0xff] 0.0
      %82 = vst [vmem:[#allocation9] sm:$0xff] 0.0
    $region29: #{tpu_custom_call.1} parent=1 // pred_fallthru
      _
    %v83 = vld [vmem:[#allocation5] sm:$0xff]
    %v84 = vld [vmem:[#allocation5 + $0x8] sm:$0xff]
    %v85 = vld [vmem:[#allocation7] sm:$0xff]
    %v86 = vld [vmem:[#allocation7 + $0x8] sm:$0xff]
    %v87 = vld [vmem:[#allocation2] sm:$0xff]
    %v88 = vld [vmem:[#allocation2 + $0x8] sm:$0xff]
    %v89 = vsub.f32 %v83, %v85
    %v90 = vsub.f32 %v84, %v86
    %v91 = vand.u32 2147483647, %v89
    %v92 = vand.u32 2147483647, %v90
    %v93 = vsub.f32 %v83, %v87
    %v94 = vsub.f32 %v84, %v88
    %v95 = vand.u32 2147483647, %v93
    %v96 = vand.u32 2147483647, %v94
    %v97 = vld [vmem:[#allocation8] sm:$0xff]
    %v98 = vadd.f32 %v91, %v92
    %v99 = vadd.f32 %v97, %v98
    %100 = vst [vmem:[#allocation8] sm:$0xff] %v99
    %v101 = vld [vmem:[#allocation9] sm:$0xff]
    %v102 = vadd.f32 %v95, %v96
    %v103 = vadd.f32 %v101, %v102
    %104 = vst [vmem:[#allocation9] sm:$0xff] %v103
    // Predicated region
    $region30: #{tpu_custom_call.1} parent=1 // pred_check
      _
    $region31: #{tpu_custom_call.1} parent=1 // pred_check_branch
      %106 = sbr.rel (0) target = $region33
    $region32: #{tpu_custom_call.1} parent=1 // pred_region
      %s108 = ssub.s32 128, 128
      %109 = vsyncadd [#allocation4], %s108
      %s111 = sshll.u32 [#allocation8], 4
      %s112 = int_to_ptr.vmem [resolvable:$true] %s111
      %114 = dma.vmem_to_hbm [thread:$0]  %s112, 128, %s3, [#allocation4]
    $region33: #{tpu_custom_call.1} parent=1 // pred_fallthru
      _
    // Predicated region
    $region34: #{tpu_custom_call.1} parent=1 // pred_check
      _
    $region35: #{tpu_custom_call.1} parent=1 // pred_check_branch
      %116 = sbr.rel (0) target = $region37
    $region36: #{tpu_custom_call.1} parent=1 // pred_region
      %s118 = ssub.s32 128, 128
      %119 = vsyncadd [#allocation10], %s118
      %s121 = sshll.u32 [#allocation9], 4
      %s122 = int_to_ptr.vmem [resolvable:$true] %s121
      %124 = dma.vmem_to_hbm [thread:$0]  %s122, 128, %s4, [#allocation10]
    $region37: #{tpu_custom_call.1} parent=1 // pred_fallthru
      _
    // Predicated region
    $region38: #{tpu_custom_call.1} parent=1 // pred_check
      _
    $region39: #{tpu_custom_call.1} parent=1 // pred_check_branch
      %126 = sbr.rel (0) target = $region41
    $region40: #{tpu_custom_call.1} parent=1 // pred_region
      %127 = dma.done [#allocation4], 128
    $region41: #{tpu_custom_call.1} parent=1 // pred_fallthru
      _
    // Predicated region
    $region42: #{tpu_custom_call.1} parent=1 // pred_check
      _
    $region43: #{tpu_custom_call.1} parent=1 // pred_check_branch
      %129 = sbr.rel (0) target = $region45
    $region44: #{tpu_custom_call.1} parent=1 // pred_region
      %130 = dma.done [#allocation10], 128
    $region45: #{tpu_custom_call.1} parent=1 // pred_fallthru
      _
    %131 = vsyncpa [#allocation3], 1
    %132 = vsyncpa [#allocation6], 1
    %133 = vsyncpa [#allocation4], 1
    %134 = vsyncpa [#allocation10], 1

</llo_original>
